<compile_context>
chip_gen: v7x
topology: tpu7x:2x2x1
jax: 0.10.0
libtpu: 0.0.40
codegen_flags: <defaults>
</compile_context>

<pallas_src>
import functools
import math

import jax
import jax.numpy as jnp
from jax.experimental import pallas as pl
from jax.experimental.pallas import tpu as pltpu

_INV_SQRT2 = 1.0 / math.sqrt(2.0)


def _round_up(x, m):
    return (x + m - 1) // m * m


def _cdiv(a, b):
    return -(-a // b)


def _pad2d(a, rows, cols):
    pr, pc = rows - a.shape[0], cols - a.shape[1]
    if pr == 0 and pc == 0:
        return a
    return jnp.pad(a, ((0, pr), (0, pc)))


def _pick_tk(inner_p, desired):
    """Largest multiple of 128 <= desired that divides inner_p (inner_p % 128 == 0)."""
    desired = max(128, min(_round_up(desired, 128), inner_p))
    for cand in range(desired, 127, -128):
        if inner_p % cand == 0:
            return cand
    return 128


def _gelu_erf_to(x_f32, out_dtype):
    """Exact erf GELU: gate evaluated in f32, final product in out_dtype.

    Matches torch.nn.functional.gelu (erf form). For out_dtype == f32 this is
    exactly 0.5*x*(1+erf(x/sqrt(2))); for bf16 the last multiply is bf16, which
    reuses the cast that the following MXU matmul needs anyway.
    """
    gate = (0.5 * (1.0 + jax.lax.erf(x_f32 * _INV_SQRT2))).astype(out_dtype)
    return x_f32.astype(out_dtype) * gate


# ----------------------------- kernels -----------------------------

def _mlp_resident_kernel(x_ref, wfc_ref, bfc_ref, wproj_ref, bproj_ref, o_ref):
    """Both weights resident (single-buffered) in VMEM; grid over row tiles."""
    h = jnp.dot(x_ref[...], wfc_ref[...], preferred_element_type=jnp.float32)
    h = h + bfc_ref[...]
    g = _gelu_erf_to(h, wproj_ref.dtype)
    o = jnp.dot(g, wproj_ref[...], preferred_element_type=jnp.float32)
    o_ref[...] = (o + bproj_ref[...]).astype(o_ref.dtype)


def _mlp_streamed_kernel(x_ref, wfc_ref, bfc_ref, wproj_ref, bproj_ref,
                         o_ref, acc_ref):
    """Streams the Inner dim: grid=(row_tiles, inner_chunks), f32 accumulator."""
    k = pl.program_id(1)

    @pl.when(k == 0)
    def _():
        acc_ref[...] = jnp.zeros_like(acc_ref)

    h = jnp.dot(x_ref[...], wfc_ref[...], preferred_element_type=jnp.float32)
    h = h + bfc_ref[...]
    g = _gelu_erf_to(h, wproj_ref.dtype)
    acc_ref[...] += jnp.dot(g, wproj_ref[...],
                            preferred_element_type=jnp.float32)

    @pl.when(k == pl.num_programs(1) - 1)
    def _():
        o_ref[...] = (acc_ref[...] + bproj_ref[...]).astype(o_ref.dtype)


# ----------------------------- weight prep (one-time) -----------------------------

def prepare_gpt2_mlp_weights(w_fc, b_fc, w_proj, b_proj, *, compute_dtype=None):
    """One-time pad/cast of the MLP parameters (call once at model load).

    Pads feature dims to multiples of 128 (lane-dense, full MXU tiles) and
    optionally casts weights to `compute_dtype` (e.g. jnp.bfloat16) once,
    instead of re-reading/re-writing tens of MB of weights on every forward.
    """
    D, Inner = w_fc.shape
    w_dtype = (jnp.dtype(compute_dtype) if compute_dtype is not None
               else jnp.dtype(w_fc.dtype))
    Dp = _round_up(D, 128)
    Ip = _round_up(Inner, 128)
    return {
        "w_fc": _pad2d(w_fc.astype(w_dtype), Dp, Ip),
        "w_proj": _pad2d(w_proj.astype(w_dtype), Ip, Dp),
        "b_fc": _pad2d(b_fc.astype(jnp.float32).reshape(1, Inner), 1, Ip),
        "b_proj": _pad2d(b_proj.astype(jnp.float32).reshape(1, D), 1, Dp),
        "D": D,
        "Inner": Inner,
        "compute_dtype": w_dtype,
    }


# ----------------------------- forward -----------------------------

def gpt2_mlp_forward(hidden_states, prepared, *, tm=None, tk=None,
                     force_streamed=None):
    """GPT-2 MLP forward using pre-padded/pre-cast weights from prepare_*()."""
    orig_shape = hidden_states.shape
    out_dtype = hidden_states.dtype
    D, Inner = prepared["D"], prepared["Inner"]
    w_dtype = jnp.dtype(prepared["compute_dtype"])
    wfc, bfc = prepared["w_fc"], prepared["b_fc"]
    wproj, bproj = prepared["w_proj"], prepared["b_proj"]
    Dp, Ip = wfc.shape
    itm_w = w_dtype.itemsize
    itm_o = jnp.dtype(out_dtype).itemsize

    x2d = hidden_states.reshape(-1, D)
    M = x2d.shape[0]

    # ---- physical VMEM of this chip generation (v5e/v6e: 128 MiB, v7x: 64 MiB)
    try:
        vmem_cap = int(pltpu.get_tpu_info().vmem_capacity_bytes)
    except Exception:
        vmem_cap = 64 << 20  # conservative (v7x per-TC VMEM)
    headroom = 8 << 20
    budget = vmem_cap - 2 * headroom          # decision threshold
    hard_cap = vmem_cap - headroom // 2       # never request more than this

    # ---- row tile: big (512) to amortize per-step overhead / fill the MXU,
    # shrunk for tiny inputs; rows aligned to the packed-sublane multiple.
    row_align = {1: 32, 2: 16}.get(itm_w, 8)
    tm_req = 512 if tm is None else tm
    tm_eff = _round_up(max(row_align, min(tm_req, _round_up(M, row_align))),
                       row_align)
    # Keep both v7x TensorCores busy: never a single fat row tile for real M.
    if _cdiv(M, tm_eff) == 1 and M >= 256:
        tm_eff = _round_up(_cdiv(M, 2), row_align)

    # ---- resident-weights VMEM estimate (tightened: includes cast copy of h
    # and the f32 output tile before the final cast).
    def _resident_bytes(tm_):
        return (2 * Dp * Ip * itm_w            # W_fc + W_proj (single-buffered)
                + (Ip + Dp) * 4                # f32 biases
                + 2 * tm_ * Dp * itm_w         # x tiles (double-buffered)
                + 2 * tm_ * Dp * itm_o         # out tiles (double-buffered)
                + tm_ * Ip * 4                 # h (f32 matmul result)
                + tm_ * Ip * itm_w             # h cast for second matmul
                + tm_ * Dp * 4)                # o (f32 before output cast)

    resident_est = _resident_bytes(tm_eff)
    use_streamed = (force_streamed if force_streamed is not None
                    else resident_est > budget)

    if not use_streamed:
        Mp = _round_up(M, tm_eff)
        xp = _pad2d(x2d.astype(w_dtype), Mp, Dp)
        vmem_limit = int(min(max(resident_est + headroom, 32 << 20), hard_cap))

        out2d = pl.pallas_call(
            _mlp_resident_kernel,
            out_shape=jax.ShapeDtypeStruct((Mp, Dp), out_dtype),
            grid_spec=pltpu.PrefetchScalarGridSpec(
                num_scalar_prefetch=0,
                grid=(Mp // tm_eff,),
                in_specs=[
                    pl.BlockSpec((tm_eff, Dp), lambda i: (i, 0)),
                    pl.BlockSpec((Dp, Ip), lambda i: (0, 0),
                                 pipeline_mode=pl.Buffered(1)),
                    pl.BlockSpec((1, Ip), lambda i: (0, 0),
                                 pipeline_mode=pl.Buffered(1)),
                    pl.BlockSpec((Ip, Dp), lambda i: (0, 0),
                                 pipeline_mode=pl.Buffered(1)),
                    pl.BlockSpec((1, Dp), lambda i: (0, 0),
                                 pipeline_mode=pl.Buffered(1)),
                ],
                out_specs=pl.BlockSpec((tm_eff, Dp), lambda i: (i, 0)),
            ),
            compiler_params=pltpu.CompilerParams(
                dimension_semantics=("parallel",),
                vmem_limit_bytes=vmem_limit),
        )(xp, wfc, bfc, wproj, bproj)
    else:
        # ---- streamed Inner dim: weight traffic is (#row tiles) x full weights,
        # so keep tm large and make each streamed weight-DMA row >= ~4 KiB.
        desired_tk = (4096 // itm_w) if tk is None else tk
        min_tk = min(Ip, 2048 // itm_w)       # >=512 f32, >=1024 bf16
        tm_s = tm_eff
        tk_s = _pick_tk(Ip, desired_tk)

        def _streamed_bytes(tm_, tk_):
            return (2 * Dp * tk_ * itm_w       # W_fc column blocks (dbl-buffered)
                    + 2 * tk_ * Dp * itm_w     # W_proj row blocks (dbl-buffered)
                    + 2 * tk_ * 4 + Dp * 4     # biases
                    + 2 * tm_ * Dp * itm_w     # x tiles
                    + 2 * tm_ * Dp * itm_o     # out tiles
                    + tm_ * Dp * 4             # f32 accumulator scratch
                    + tm_ * Dp * 4             # second-dot f32 result
                    + tm_ * tk_ * 4            # h chunk (f32)
                    + tm_ * tk_ * itm_w)       # h chunk cast for second dot

        # Fit in VMEM: shrink tk first (keeps weight re-reads low), then tm.
        while _streamed_bytes(tm_s, tk_s) > budget:
            if tk_s > min_tk:
                tk_s = _pick_tk(Ip, tk_s - 128)
            elif tm_s > 2 * row_align:
                tm_s = _round_up(tm_s // 2, row_align)
            else:
                break

        Mp = _round_up(M, tm_s)
        xp = _pad2d(x2d.astype(w_dtype), Mp, Dp)
        streamed_est = _streamed_bytes(tm_s, tk_s)
        vmem_limit = int(min(max(streamed_est + headroom, 32 << 20), hard_cap))

        out2d = pl.pallas_call(
            _mlp_streamed_kernel,
            out_shape=jax.ShapeDtypeStruct((Mp, Dp), out_dtype),
            grid_spec=pltpu.PrefetchScalarGridSpec(
                num_scalar_prefetch=0,
                grid=(Mp // tm_s, Ip // tk_s),
                in_specs=[
                    pl.BlockSpec((tm_s, Dp), lambda i, k: (i, 0)),
                    pl.BlockSpec((Dp, tk_s), lambda i, k: (0, k)),
                    pl.BlockSpec((1, tk_s), lambda i, k: (0, k)),
                    pl.BlockSpec((tk_s, Dp), lambda i, k: (k, 0)),
                    pl.BlockSpec((1, Dp), lambda i, k: (0, 0),
                                 pipeline_mode=pl.Buffered(1)),
                ],
                out_specs=pl.BlockSpec((tm_s, Dp), lambda i, k: (i, 0)),
                scratch_shapes=[pltpu.VMEM((tm_s, Dp), jnp.float32)],
            ),
            compiler_params=pltpu.CompilerParams(
                dimension_semantics=("parallel", "arbitrary"),
                vmem_limit_bytes=vmem_limit),
        )(xp, wfc, bfc, wproj, bproj)

    return out2d[:M, :D].reshape(orig_shape)


def gpt2_mlp(hidden_states, w_fc, b_fc, w_proj, b_proj, *, compute_dtype=None,
             tm=None, tk=None, force_streamed=None):
    """Convenience wrapper: prepares weights on the fly, then runs the kernel.

    For production use, call prepare_gpt2_mlp_weights() once and reuse the
    result with gpt2_mlp_forward() so the pad/cast is not repeated per call.
    """
    prepared = prepare_gpt2_mlp_weights(w_fc, b_fc, w_proj, b_proj,
                                        compute_dtype=compute_dtype)
    return gpt2_mlp_forward(hidden_states, prepared, tm=tm, tk=tk,
                            force_streamed=force_streamed)


def _reference(x, w_fc, b_fc, w_proj, b_proj):
    h = jnp.dot(x, w_fc, precision=jax.lax.Precision.HIGHEST) + b_fc
    h = 0.5 * h * (1.0 + jax.lax.erf(h * _INV_SQRT2))
    return jnp.dot(h, w_proj, precision=jax.lax.Precision.HIGHEST) + b_proj


if __name__ == "__main__":
    key = jax.random.PRNGKey(0)
    k_x, k_wfc, k_bfc, k_wproj, k_bproj, k_x2 = jax.random.split(key, 6)

    # Small, lane-dense shapes consistent with the module (intermediate = 4*D).
    batch, seq, embed_dim = 2, 8, 128
    inner = 4 * embed_dim

    x = jax.random.normal(k_x, (batch, seq, embed_dim), dtype=jnp.float32)
    w_fc = 0.02 * jax.random.normal(k_wfc, (embed_dim, inner), dtype=jnp.float32)
    b_fc = 0.02 * jax.random.normal(k_bfc, (inner,), dtype=jnp.float32)
    w_proj = 0.02 * jax.random.normal(k_wproj, (inner, embed_dim), dtype=jnp.float32)
    b_proj = 0.02 * jax.random.normal(k_bproj, (embed_dim,), dtype=jnp.float32)

    ref = _reference(x, w_fc, b_fc, w_proj, b_proj)

    # 1) default path: f32, resident weights, prepared once and reused.
    prepared = prepare_gpt2_mlp_weights(w_fc, b_fc, w_proj, b_proj)
    out = jax.block_until_ready(gpt2_mlp_forward(x, prepared))
    assert out.shape == x.shape and out.dtype == x.dtype
    assert jnp.allclose(out, ref, atol=1e-4, rtol=1e-4), "resident f32 mismatch"
    out_again = jax.block_until_ready(gpt2_mlp_forward(x, prepared))
    assert jnp.allclose(out_again, out), "prepared-weights reuse mismatch"

    # 2) streamed inner-dim path (layout used when weights don't fit VMEM).
    out_s = jax.block_until_ready(
        gpt2_mlp(x, w_fc, b_fc, w_proj, b_proj, force_streamed=True, tk=128))
    assert jnp.allclose(out_s, ref, atol=1e-4, rtol=1e-4), "streamed f32 mismatch"

    # 3) bf16 MXU inputs with f32 accumulation (relaxed tolerance vs f32 ref).
    out_bf = jax.block_until_ready(
        gpt2_mlp(x, w_fc, b_fc, w_proj, b_proj, compute_dtype=jnp.bfloat16))
    assert jnp.allclose(out_bf, ref, atol=5e-2, rtol=5e-2), "bf16 mismatch"

    # 4) ragged shape exercising row/feature padding (D=96 -> padded to 128).
    x2 = jax.random.normal(k_x2, (2, 5, 96), dtype=jnp.float32)
    w_fc2 = 0.02 * jax.random.normal(k_wfc, (96, 384), dtype=jnp.float32)
    b_fc2 = 0.02 * jax.random.normal(k_bfc, (384,), dtype=jnp.float32)
    w_proj2 = 0.02 * jax.random.normal(k_wproj, (384, 96), dtype=jnp.float32)
    b_proj2 = 0.02 * jax.random.normal(k_bproj, (96,), dtype=jnp.float32)
    out2 = jax.block_until_ready(gpt2_mlp(x2, w_fc2, b_fc2, w_proj2, b_proj2))
    ref2 = _reference(x2, w_fc2, b_fc2, w_proj2, b_proj2)
    assert out2.shape == x2.shape
    assert jnp.allclose(out2, ref2, atol=1e-4, rtol=1e-4), "padded-shape mismatch"

    print("KERNEL_OK")
</pallas_src>

<mosaic_0001>
module attributes {stable_mosaic.version = 11 : i64} {
  func.func @_mlp_resident_kernel(%arg0: i32, %arg1: memref<16x128xf32, #tpu.memory_space<vmem>>, %arg2: memref<128x512xf32, #tpu.memory_space<vmem>>, %arg3: memref<1x512xf32, #tpu.memory_space<vmem>>, %arg4: memref<512x128xf32, #tpu.memory_space<vmem>>, %arg5: memref<1x128xf32, #tpu.memory_space<vmem>>, %arg6: memref<16x128xf32, #tpu.memory_space<vmem>>) attributes {dimension_semantics = [#tpu.dimension_semantics<parallel>], iteration_bounds = array<i64: 1>, scalar_prefetch = 0 : i64, scratch_operands = 0 : i64, tpu.core_type = #tpu.core_type<tc>, window_params = [{transform_indices = @transform_0, window_bounds = array<i64: 16, 128>}, {pipeline_mode = #tpu.pipeline_mode<synchronous>, transform_indices = @transform_1, window_bounds = array<i64: 128, 512>}, {pipeline_mode = #tpu.pipeline_mode<synchronous>, transform_indices = @transform_2, window_bounds = array<i64: 1, 512>}, {pipeline_mode = #tpu.pipeline_mode<synchronous>, transform_indices = @transform_3, window_bounds = array<i64: 512, 128>}, {pipeline_mode = #tpu.pipeline_mode<synchronous>, transform_indices = @transform_4, window_bounds = array<i64: 1, 128>}, {transform_indices = @transform_5, window_bounds = array<i64: 16, 128>}]} {
    %c0 = arith.constant 0 : index
    %c0_0 = arith.constant 0 : index
    %0 = vector.load %arg1[%c0, %c0_0] : memref<16x128xf32, #tpu.memory_space<vmem>>, vector<16x128xf32>
    %c0_1 = arith.constant 0 : index
    %c0_2 = arith.constant 0 : index
    %1 = vector.load %arg2[%c0_1, %c0_2] : memref<128x512xf32, #tpu.memory_space<vmem>>, vector<128x512xf32>
    %cst = arith.constant dense<0.000000e+00> : vector<16x512xf32>
    %2 = tpu.matmul %0, %1, %cst {dimension_numbers = #tpu.dot_dimension_numbers<[1], [0], [0], [1], [0, 0, 1, 1], [], []>} : vector<16x128xf32>, vector<128x512xf32>, vector<16x512xf32> -> vector<16x512xf32>
    %c0_3 = arith.constant 0 : index
    %c0_4 = arith.constant 0 : index
    %3 = vector.load %arg3[%c0_3, %c0_4] : memref<1x512xf32, #tpu.memory_space<vmem>>, vector<1x512xf32>
    %4 = vector.broadcast %3 : vector<1x512xf32> to vector<16x512xf32>
    %5 = arith.addf %2, %4 : vector<16x512xf32>
    %cst_5 = arith.constant 0.707106769 : f32
    %6 = vector.broadcast %cst_5 : f32 to vector<16x512xf32>
    %7 = arith.mulf %5, %6 : vector<16x512xf32>
    %8 = math.erf %7 : vector<16x512xf32>
    %cst_6 = arith.constant 1.000000e+00 : f32
    %9 = vector.broadcast %cst_6 : f32 to vector<16x512xf32>
    %10 = arith.addf %9, %8 : vector<16x512xf32>
    %cst_7 = arith.constant 5.000000e-01 : f32
    %11 = vector.broadcast %cst_7 : f32 to vector<16x512xf32>
    %12 = arith.mulf %11, %10 : vector<16x512xf32>
    %13 = arith.mulf %5, %12 : vector<16x512xf32>
    %c0_8 = arith.constant 0 : index
    %c0_9 = arith.constant 0 : index
    %14 = vector.load %arg4[%c0_8, %c0_9] : memref<512x128xf32, #tpu.memory_space<vmem>>, vector<512x128xf32>
    %cst_10 = arith.constant dense<0.000000e+00> : vector<16x128xf32>
    %15 = tpu.matmul %13, %14, %cst_10 {dimension_numbers = #tpu.dot_dimension_numbers<[1], [0], [0], [1], [0, 0, 1, 1], [], []>} : vector<16x512xf32>, vector<512x128xf32>, vector<16x128xf32> -> vector<16x128xf32>
    %c0_11 = arith.constant 0 : index
    %c0_12 = arith.constant 0 : index
    %16 = vector.load %arg5[%c0_11, %c0_12] : memref<1x128xf32, #tpu.memory_space<vmem>>, vector<1x128xf32>
    %17 = vector.broadcast %16 : vector<1x128xf32> to vector<16x128xf32>
    %18 = arith.addf %15, %17 : vector<16x128xf32>
    %c0_13 = arith.constant 0 : index
    %c0_14 = arith.constant 0 : index
    %19 = vector.load %arg6[%c0_13, %c0_14] : memref<16x128xf32, #tpu.memory_space<vmem>>, vector<16x128xf32>
    tpu.vector_store %arg6[%c0_13, %c0_14], %18 {strides = array<i32>} : memref<16x128xf32, #tpu.memory_space<vmem>>, vector<16x128xf32>,
    return
  }
  func.func @transform_0(%arg0: i32) -> (i32, i32) {
    %c0_i32 = arith.constant 0 : i32
    %c0_i32_0 = arith.constant 0 : i32
    return %arg0, %c0_i32 : i32, i32
  }
  func.func @transform_1(%arg0: i32) -> (i32, i32) {
    %c0_i32 = arith.constant 0 : i32
    %c0_i32_0 = arith.constant 0 : i32
    %c0_i32_1 = arith.constant 0 : i32
    return %c0_i32, %c0_i32_0 : i32, i32
  }
  func.func @transform_2(%arg0: i32) -> (i32, i32) {
    %c0_i32 = arith.constant 0 : i32
    %c0_i32_0 = arith.constant 0 : i32
    %c0_i32_1 = arith.constant 0 : i32
    return %c0_i32, %c0_i32_0 : i32, i32
  }
  func.func @transform_3(%arg0: i32) -> (i32, i32) {
    %c0_i32 = arith.constant 0 : i32
    %c0_i32_0 = arith.constant 0 : i32
    %c0_i32_1 = arith.constant 0 : i32
    return %c0_i32, %c0_i32_0 : i32, i32
  }
  func.func @transform_4(%arg0: i32) -> (i32, i32) {
    %c0_i32 = arith.constant 0 : i32
    %c0_i32_0 = arith.constant 0 : i32
    %c0_i32_1 = arith.constant 0 : i32
    return %c0_i32, %c0_i32_0 : i32, i32
  }
  func.func @transform_5(%arg0: i32) -> (i32, i32) {
    %c0_i32 = arith.constant 0 : i32
    %c0_i32_0 = arith.constant 0 : i32
    return %arg0, %c0_i32 : i32, i32
  }
}

</mosaic_0001>

<llo_original>
// kernel: tpu_custom_call.1
$region0: #{tpu_custom_call.1}
  #allocation0 [shape = 'u32[]', space=smem, size = 0x4, offset = 0x4, fixed_abs, tag = 'smem constant byte address 0x4 - core index']
  #allocation1 [shape = 'u32[144,128]{1,0:T(1,128)}', space=vmem, size = 0x12000, scoped, tag = 'internal scratch']
  %s0 = inlined_call_operand.hbm [shape: f32[16,128], index: 0, kind: input, shape index: {}]
  %s1 = inlined_call_operand.hbm [shape: f32[128,512], index: 1, kind: input, shape index: {}]
  %s2 = inlined_call_operand.vmem [shape: f32[1,512], index: 2, kind: input, shape index: {}]
  %s3 = inlined_call_operand.hbm [shape: f32[512,128], index: 3, kind: input, shape index: {}]
  %s4 = inlined_call_operand.vmem [shape: f32[1,128], index: 4, kind: input, shape index: {}]
  %s5 = inlined_call_operand.hbm [shape: f32[16,128], index: 5, kind: output, shape index: {}]
  %s6 = sld [smem:[#allocation0]]
  $region42: #{tpu_custom_call.1} parent=0
    _
  %s8 = ssub.s32 1, %s6
  %s9 = scalar_select 0, %s8, %s6
  $region1: #{tpu_custom_call.1} parent=0
    #allocation2 [shape = 'u8[8192]{0}', space=vmem, size = 0x2000, scoped, tag = 'input window, operand 0, single buffered']
    #allocation3 [shape = 's32[1]{0}', space=sflag, size = 0x4, scoped, tag = 'scoped memory for tpu_custom_call.1']
    #allocation4 [shape = 's32[1]{0}', space=sflag, size = 0x4, scoped, tag = 'scoped memory for tpu_custom_call.1']
    #allocation5 [shape = 'u8[262144]{0}', space=vmem, size = 0x40000, scoped, tag = 'input window, operand 1, single buffered']
    #allocation6 [shape = 's32[1]{0}', space=sflag, size = 0x4, scoped, tag = 'scoped memory for tpu_custom_call.1']
    #allocation7 [shape = 'u8[262144]{0}', space=vmem, size = 0x40000, scoped, tag = 'input window, operand 3, single buffered']
    #allocation8 [shape = 'u8[8192]{0}', space=vmem, size = 0x2000, scoped, tag = 'output window, operand 0, single buffered']
    %10 = vsyncpa [#allocation3], 0
    %11 = vsyncpa [#allocation6], 0
    %12 = vsyncpa [#allocation4], 0
    // Predicated region
    $region2: #{tpu_custom_call.1} parent=1 // pred_check
      _
    $region3: #{tpu_custom_call.1} parent=1 // pred_check_branch
      %14 = sbr.rel (0) target = $region5
    $region4: #{tpu_custom_call.1} parent=1 // pred_region
      %s16 = ssub.s32 256, 256
      %17 = vsyncadd [#allocation3], %s16
      %s18 = sshll.u32 [#allocation2], 4
      %s19 = int_to_ptr.vmem [resolvable:$true] %s18
      %24 = dma.hbm_to_vmem [thread:$0]  %s0, 256, %s19, [#allocation3], 128, 128, 8
    $region5: #{tpu_custom_call.1} parent=1 // pred_fallthru
      _
    // Predicated region
    $region6: #{tpu_custom_call.1} parent=1 // pred_check
      _
    $region7: #{tpu_custom_call.1} parent=1 // pred_check_branch
      %26 = sbr.rel (0) target = $region9
    $region8: #{tpu_custom_call.1} parent=1 // pred_region
      %s28 = ssub.s32 8192, 8192
      %29 = vsyncadd [#allocation6], %s28
      %s30 = sshll.u32 [#allocation5], 4
      %s31 = int_to_ptr.vmem [resolvable:$true] %s30
      %36 = dma.hbm_to_vmem [thread:$0]  %s1, 8192, %s31, [#allocation6], 512, 512, 32
    $region9: #{tpu_custom_call.1} parent=1 // pred_fallthru
      _
    // Predicated region
    $region10: #{tpu_custom_call.1} parent=1 // pred_check
      _
    $region11: #{tpu_custom_call.1} parent=1 // pred_check_branch
      %38 = sbr.rel (0) target = $region13
    $region12: #{tpu_custom_call.1} parent=1 // pred_region
      _
    $region13: #{tpu_custom_call.1} parent=1 // pred_fallthru
      _
    // Predicated region
    $region14: #{tpu_custom_call.1} parent=1 // pred_check
      _
    $region15: #{tpu_custom_call.1} parent=1 // pred_check_branch
      %40 = sbr.rel (0) target = $region17
    $region16: #{tpu_custom_call.1} parent=1 // pred_region
      %s42 = ssub.s32 8192, 8192
      %43 = vsyncadd [#allocation6], %s42
      %s44 = sshll.u32 [#allocation7], 4
      %s45 = int_to_ptr.vmem [resolvable:$true] %s44
      %50 = dma.hbm_to_vmem [thread:$0]  %s3, 8192, %s45, [#allocation6], 128, 128, 8
    $region17: #{tpu_custom_call.1} parent=1 // pred_fallthru
      _
    // Predicated region
    $region18: #{tpu_custom_call.1} parent=1 // pred_check
      _
    $region19: #{tpu_custom_call.1} parent=1 // pred_check_branch
      %52 = sbr.rel (0) target = $region21
    $region20: #{tpu_custom_call.1} parent=1 // pred_region
      _
    $region21: #{tpu_custom_call.1} parent=1 // pred_fallthru
      _
    // Predicated region
    $region22: #{tpu_custom_call.1} parent=1 // pred_check
      _
    $region23: #{tpu_custom_call.1} parent=1 // pred_check_branch
      %54 = sbr.rel (0) target = $region25
    $region24: #{tpu_custom_call.1} parent=1 // pred_region
      %55 = dma.done [#allocation3], 256
    $region25: #{tpu_custom_call.1} parent=1 // pred_fallthru
      _
    // Predicated region
    $region26: #{tpu_custom_call.1} parent=1 // pred_check
      _
    $region27: #{tpu_custom_call.1} parent=1 // pred_check_branch
      %57 = sbr.rel (0) target = $region29
    $region28: #{tpu_custom_call.1} parent=1 // pred_region
      %58 = dma.done [#allocation6], 8192
    $region29: #{tpu_custom_call.1} parent=1 // pred_fallthru
      _
    // Predicated region
    $region30: #{tpu_custom_call.1} parent=1 // pred_check
      _
    $region31: #{tpu_custom_call.1} parent=1 // pred_check_branch
      %60 = sbr.rel (0) target = $region33
    $region32: #{tpu_custom_call.1} parent=1 // pred_region
      %61 = dma.done [#allocation6], 8192
    $region33: #{tpu_custom_call.1} parent=1 // pred_fallthru
      _
    %v62 = vld [vmem:[#allocation2] sm:$0xff]
    %v63 = vld [vmem:[#allocation2 + $0x8] sm:$0xff]
    %v64 = vld [vmem:[#allocation5] sm:$0xff]
    %v65 = vld [vmem:[#allocation5 + $0x8] sm:$0xff]
    %v66 = vld [vmem:[#allocation5 + $0x10] sm:$0xff]
    %v67 = vld [vmem:[#allocation5 + $0x18] sm:$0xff]
    %v68 = vld [vmem:[#allocation5 + $0x20] sm:$0xff]
    %v69 = vld [vmem:[#allocation5 + $0x28] sm:$0xff]
    %v70 = vld [vmem:[#allocation5 + $0x30] sm:$0xff]
    %v71 = vld [vmem:[#allocation5 + $0x38] sm:$0xff]
    %v72 = vld [vmem:[#allocation5 + $0x40] sm:$0xff]
    %v73 = vld [vmem:[#allocation5 + $0x48] sm:$0xff]
    %v74 = vld [vmem:[#allocation5 + $0x50] sm:$0xff]
    %v75 = vld [vmem:[#allocation5 + $0x58] sm:$0xff]
    %v76 = vld [vmem:[#allocation5 + $0x60] sm:$0xff]
    %v77 = vld [vmem:[#allocation5 + $0x68] sm:$0xff]
    %v78 = vld [vmem:[#allocation5 + $0x70] sm:$0xff]
    %v79 = vld [vmem:[#allocation5 + $0x78] sm:$0xff]
    %v80 = vld [vmem:[#allocation5 + $0x80] sm:$0xff]
    %v81 = vld [vmem:[#allocation5 + $0x88] sm:$0xff]
    %v82 = vld [vmem:[#allocation5 + $0x90] sm:$0xff]
    %v83 = vld [vmem:[#allocation5 + $0x98] sm:$0xff]
    %v84 = vld [vmem:[#allocation5 + $0xa0] sm:$0xff]
    %v85 = vld [vmem:[#allocation5 + $0xa8] sm:$0xff]
    %v86 = vld [vmem:[#allocation5 + $0xb0] sm:$0xff]
    %v87 = vld [vmem:[#allocation5 + $0xb8] sm:$0xff]
    %v88 = vld [vmem:[#allocation5 + $0xc0] sm:$0xff]
    %v89 = vld [vmem:[#allocation5 + $0xc8] sm:$0xff]
    %v90 = vld [vmem:[#allocation5 + $0xd0] sm:$0xff]
    %v91 = vld [vmem:[#allocation5 + $0xd8] sm:$0xff]
    %v92 = vld [vmem:[#allocation5 + $0xe0] sm:$0xff]
    %v93 = vld [vmem:[#allocation5 + $0xe8] sm:$0xff]
    %v94 = vld [vmem:[#allocation5 + $0xf0] sm:$0xff]
    %v95 = vld [vmem:[#allocation5 + $0xf8] sm:$0xff]
    %v96 = vld [vmem:[#allocation5 + $0x100] sm:$0xff]
    %v97 = vld [vmem:[#allocation5 + $0x108] sm:$0xff]
    %v98 = vld [vmem:[#allocation5 + $0x110] sm:$0xff]
    %v99 = vld [vmem:[#allocation5 + $0x118] sm:$0xff]
    %v100 = vld [vmem:[#allocation5 + $0x120] sm:$0xff]
    %v101 = vld [vmem:[#allocation5 + $0x128] sm:$0xff]
    %v102 = vld [vmem:[#allocation5 + $0x130] sm:$0xff]
    %v103 = vld [vmem:[#allocation5 + $0x138] sm:$0xff]
    %v104 = vld [vmem:[#allocation5 + $0x140] sm:$0xff]
    %v105 = vld [vmem:[#allocation5 + $0x148] sm:$0xff]
    %v106 = vld [vmem:[#allocation5 + $0x150] sm:$0xff]
    %v107 = vld [vmem:[#allocation5 + $0x158] sm:$0xff]
    %v108 = vld [vmem:[#allocation5 + $0x160] sm:$0xff]
    %v109 = vld [vmem:[#allocation5 + $0x168] sm:$0xff]
    %v110 = vld [vmem:[#allocation5 + $0x170] sm:$0xff]
    %v111 = vld [vmem:[#allocation5 + $0x178] sm:$0xff]
    %v112 = vld [vmem:[#allocation5 + $0x180] sm:$0xff]
    %v113 = vld [vmem:[#allocation5 + $0x188] sm:$0xff]
    %v114 = vld [vmem:[#allocation5 + $0x190] sm:$0xff]
    %v115 = vld [vmem:[#allocation5 + $0x198] sm:$0xff]
    %v116 = vld [vmem:[#allocation5 + $0x1a0] sm:$0xff]
    %v117 = vld [vmem:[#allocation5 + $0x1a8] sm:$0xff]
    %v118 = vld [vmem:[#allocation5 + $0x1b0] sm:$0xff]
    %v119 = vld [vmem:[#allocation5 + $0x1b8] sm:$0xff]
    %v120 = vld [vmem:[#allocation5 + $0x1c0] sm:$0xff]
    %v121 = vld [vmem:[#allocation5 + $0x1c8] sm:$0xff]
    %v122 = vld [vmem:[#allocation5 + $0x1d0] sm:$0xff]
    %v123 = vld [vmem:[#allocation5 + $0x1d8] sm:$0xff]
    %v124 = vld [vmem:[#allocation5 + $0x1e0] sm:$0xff]
    %v125 = vld [vmem:[#allocation5 + $0x1e8] sm:$0xff]
    %v126 = vld [vmem:[#allocation5 + $0x1f0] sm:$0xff]
    %v127 = vld [vmem:[#allocation5 + $0x1f8] sm:$0xff]
    %v128 = vld [vmem:[%s2] sm:$0xf]
    %v130 = vlaneseq
    %v131 = vshrl.u32 %v130, 7
    %v132 = vsub.s32 0, %v131
    %v133 = vrot.slane %v128, %v132
    %v134 = vlaneseq
    %v135 = vshrl.u32 %v134, 7
    %v136 = vsub.s32 1, %v135
    %v137 = vrot.slane %v128, %v136
    %v138 = vlaneseq
    %v139 = vshrl.u32 %v138, 7
    %v140 = vsub.s32 2, %v139
    %v141 = vrot.slane %v128, %v140
    %v142 = vlaneseq
    %v143 = vshrl.u32 %v142, 7
    %v144 = vsub.s32 3, %v143
    %v145 = vrot.slane %v128, %v144
    %150 = vmatprep.subr.mxu0 %v65
    %151 = vmatpush1.msra.mxu0 %v64
    %152 = vmatprep.subr.mxu0 %v69
    %153 = vmatpush1.msra.mxu0 %v68
    %154 = vmatprep.subr.mxu0 %v73
    %155 = vmatpush1.msra.mxu0 %v72
    %156 = vmatprep.subr.mxu0 %v77
    %157 = vmatpush1.msra.mxu0 %v76
    %158 = vmatprep.subr.mxu0 %v81
    %159 = vmatpush1.msra.mxu0 %v80
    %160 = vmatprep.subr.mxu0 %v85
    %161 = vmatpush1.msra.mxu0 %v84
    %162 = vmatprep.subr.mxu0 %v89
    %163 = vmatpush1.msra.mxu0 %v88
    %164 = vmatprep.subr.mxu0 %v93
    %165 = vmatpush1.msra.mxu0 %v92
    %166 = vmatprep.subr.mxu0 %v97
    %167 = vmatpush1.msra.mxu0 %v96
    %168 = vmatprep.subr.mxu0 %v101
    %169 = vmatpush1.msra.mxu0 %v100
    %170 = vmatprep.subr.mxu0 %v105
    %171 = vmatpush1.msra.mxu0 %v104
    %172 = vmatprep.subr.mxu0 %v109
    %173 = vmatpush1.msra.mxu0 %v108
    %174 = vmatprep.subr.mxu0 %v113
    %175 = vmatpush1.msra.mxu0 %v112
    %176 = vmatprep.subr.mxu0 %v117
    %177 = vmatpush1.msra.mxu0 %v116
    %178 = vmatprep.subr.mxu0 %v121
    %179 = vmatpush1.msra.mxu0 %v120
    %180 = vmatprep.subr.mxu0 %v125
    %181 = vmatpush1.msra.mxu0 %v124
    %182 = vmatprep.subr.mxu0 0.0
    %183 = vmatpush1.msra.mxu0 0.0
    %184 = vmatprep.subr.mxu0 0.0
    %185 = vmatpush1.msra.mxu0 0.0
    %186 = vmatprep.subr.mxu0 0.0
    %187 = vmatpush1.msra.mxu0 0.0
    %188 = vmatprep.subr.mxu0 0.0
    %189 = vmatpush1.msra.mxu0 0.0
    %190 = vmatprep.subr.mxu0 0.0
    %191 = vmatpush1.msra.mxu0 0.0
    %192 = vmatprep.subr.mxu0 0.0
    %193 = vmatpush1.msra.mxu0 0.0
    %194 = vmatprep.subr.mxu0 0.0
    %195 = vmatpush1.msra.mxu0 0.0
    %196 = vmatprep.subr.mxu0 0.0
    %197 = vmatpush1.msra.mxu0 0.0
    %198 = vmatprep.subr.mxu0 0.0
    %199 = vmatpush1.msra.mxu0 0.0
    %200 = vmatprep.subr.mxu0 0.0
    %201 = vmatpush1.msra.mxu0 0.0
    %202 = vmatprep.subr.mxu0 0.0
    %203 = vmatpush1.msra.mxu0 0.0
    %204 = vmatprep.subr.mxu0 0.0
    %205 = vmatpush1.msra.mxu0 0.0
    %206 = vmatprep.subr.mxu0 0.0
    %207 = vmatpush1.msra.mxu0 0.0
    %208 = vmatprep.subr.mxu0 0.0
    %209 = vmatpush1.msra.mxu0 0.0
    %210 = vmatprep.subr.mxu0 0.0
    %211 = vmatpush1.msra.mxu0 0.0
    %212 = vmatprep.subr.mxu0 0.0
    %213 = vmatpush1.msra.mxu0 0.0
    %214 = vmatprep.mubr.f32.mxu0 0.0
    %215 = vmatmul.mubr.f32.gmra.mrb[0].mxu0 %v62
    %v216 = vpop.f32.mrb[0].mxu0
    %v217 = vadd.f32 %v133, %v216
    %v218 = vpop.f32.mrb[0].mxu0
    %v219 = vadd.f32 %v137, %v218
    %220 = vmatprep.mubr.f32.mxu0 0.0
    %221 = vmatmul.mubr.f32.gmra.mrb[0].mxu0 %v63
    %v222 = vpop.f32.mrb[0].mxu0
    %v223 = vadd.f32 %v133, %v222
    %v224 = vpop.f32.mrb[0].mxu0
    %v225 = vadd.f32 %v137, %v224
    %226 = vdwg.mxu0
    %227 = vmatprep.subr.mxu0 %v67
    %228 = vmatpush1.msra.mxu0 %v66
    %229 = vmatprep.subr.mxu0 %v71
    %230 = vmatpush1.msra.mxu0 %v70
    %231 = vmatprep.subr.mxu0 %v75
    %232 = vmatpush1.msra.mxu0 %v74
    %233 = vmatprep.subr.mxu0 %v79
    %234 = vmatpush1.msra.mxu0 %v78
    %235 = vmatprep.subr.mxu0 %v83
    %236 = vmatpush1.msra.mxu0 %v82
    %237 = vmatprep.subr.mxu0 %v87
    %238 = vmatpush1.msra.mxu0 %v86
    %239 = vmatprep.subr.mxu0 %v91
    %240 = vmatpush1.msra.mxu0 %v90
    %241 = vmatprep.subr.mxu0 %v95
    %242 = vmatpush1.msra.mxu0 %v94
    %243 = vmatprep.subr.mxu0 %v99
    %244 = vmatpush1.msra.mxu0 %v98
    %245 = vmatprep.subr.mxu0 %v103
    %246 = vmatpush1.msra.mxu0 %v102
    %247 = vmatprep.subr.mxu0 %v107
    %248 = vmatpush1.msra.mxu0 %v106
    %249 = vmatprep.subr.mxu0 %v111
    %250 = vmatpush1.msra.mxu0 %v110
    %251 = vmatprep.subr.mxu0 %v115
    %252 = vmatpush1.msra.mxu0 %v114
    %253 = vmatprep.subr.mxu0 %v119
    %254 = vmatpush1.msra.mxu0 %v118
    %255 = vmatprep.subr.mxu0 %v123
    %256 = vmatpush1.msra.mxu0 %v122
    %257 = vmatprep.subr.mxu0 %v127
    %258 = vmatpush1.msra.mxu0 %v126
    %259 = vmatprep.subr.mxu0 0.0
    %260 = vmatpush1.msra.mxu0 0.0
    %261 = vmatprep.subr.mxu0 0.0
    %262 = vmatpush1.msra.mxu0 0.0
    %263 = vmatprep.subr.mxu0 0.0
    %264 = vmatpush1.msra.mxu0 0.0
    %265 = vmatprep.subr.mxu0 0.0
    %266 = vmatpush1.msra.mxu0 0.0
    %267 = vmatprep.subr.mxu0 0.0
    %268 = vmatpush1.msra.mxu0 0.0
    %269 = vmatprep.subr.mxu0 0.0
    %270 = vmatpush1.msra.mxu0 0.0
    %271 = vmatprep.subr.mxu0 0.0
    %272 = vmatpush1.msra.mxu0 0.0
    %273 = vmatprep.subr.mxu0 0.0
    %274 = vmatpush1.msra.mxu0 0.0
    %275 = vmatprep.subr.mxu0 0.0
    %276 = vmatpush1.msra.mxu0 0.0
    %277 = vmatprep.subr.mxu0 0.0
    %278 = vmatpush1.msra.mxu0 0.0
    %279 = vmatprep.subr.mxu0 0.0
    %280 = vmatpush1.msra.mxu0 0.0
    %281 = vmatprep.subr.mxu0 0.0
    %282 = vmatpush1.msra.mxu0 0.0
    %283 = vmatprep.subr.mxu0 0.0
    %284 = vmatpush1.msra.mxu0 0.0
    %285 = vmatprep.subr.mxu0 0.0
    %286 = vmatpush1.msra.mxu0 0.0
    %287 = vmatprep.subr.mxu0 0.0
    %288 = vmatpush1.msra.mxu0 0.0
    %289 = vmatprep.subr.mxu0 0.0
    %290 = vmatpush1.msra.mxu0 0.0
    %291 = vmatprep.mubr.f32.mxu0 0.0
    %292 = vmatmul.mubr.f32.gmra.mrb[0].mxu0 %v62
    %v293 = vpop.f32.mrb[0].mxu0
    %v294 = vadd.f32 %v141, %v293
    %v295 = vpop.f32.mrb[0].mxu0
    %v296 = vadd.f32 %v145, %v295
    %297 = vmatprep.mubr.f32.mxu0 0.0
    %298 = vmatmul.mubr.f32.gmra.mrb[0].mxu0 %v63
    %v299 = vpop.f32.mrb[0].mxu0
    %v300 = vadd.f32 %v141, %v299
    %v301 = vpop.f32.mrb[0].mxu0
    %v302 = vadd.f32 %v145, %v301
    %303 = vdwg.mxu0
    %v304 = vmul.f32 %v217, 0.70710677
    %v305 = vmul.f32 %v219, 0.70710677
    %v306 = vmul.f32 %v294, 0.70710677
    %v307 = vmul.f32 %v296, 0.70710677
    %v308 = vmul.f32 %v223, 0.70710677
    %v309 = vmul.f32 %v225, 0.70710677
    %v310 = vmul.f32 %v300, 0.70710677
    %v311 = vmul.f32 %v302, 0.70710677
    %v312 = verf.f32.pop %v304
    %v313 = verf.f32.pop %v305
    %v314 = verf.f32.pop %v306
    %v315 = verf.f32.pop %v307
    %v316 = verf.f32.pop %v308
    %v317 = verf.f32.pop %v309
    %v318 = verf.f32.pop %v310
    %v319 = verf.f32.pop %v311
    %v320 = vadd.f32 %v312, 1.0
    %v321 = vadd.f32 %v313, 1.0
    %v322 = vadd.f32 %v314, 1.0
    %v323 = vadd.f32 %v315, 1.0
    %v324 = vadd.f32 %v316, 1.0
    %v325 = vadd.f32 %v317, 1.0
    %v326 = vadd.f32 %v318, 1.0
    %v327 = vadd.f32 %v319, 1.0
    %v328 = vmul.f32 %v320, 0.5
    %v329 = vmul.f32 %v321, 0.5
    %v330 = vmul.f32 %v322, 0.5
    %v331 = vmul.f32 %v323, 0.5
    %v332 = vmul.f32 %v324, 0.5
    %v333 = vmul.f32 %v325, 0.5
    %v334 = vmul.f32 %v326, 0.5
    %v335 = vmul.f32 %v327, 0.5
    %v336 = vmul.f32 %v217, %v328
    %v337 = vmul.f32 %v219, %v329
    %v338 = vmul.f32 %v294, %v330
    %v339 = vmul.f32 %v296, %v331
    %v340 = vmul.f32 %v223, %v332
    %v341 = vmul.f32 %v225, %v333
    %v342 = vmul.f32 %v300, %v334
    %v343 = vmul.f32 %v302, %v335
    %v344 = vld [vmem:[#allocation7] sm:$0xff]
    %v345 = vld [vmem:[#allocation7 + $0x8] sm:$0xff]
    %v346 = vld [vmem:[#allocation7 + $0x10] sm:$0xff]
    %v347 = vld [vmem:[#allocation7 + $0x18] sm:$0xff]
    %v348 = vld [vmem:[#allocation7 + $0x20] sm:$0xff]
    %v349 = vld [vmem:[#allocation7 + $0x28] sm:$0xff]
    %v350 = vld [vmem:[#allocation7 + $0x30] sm:$0xff]
    %v351 = vld [vmem:[#allocation7 + $0x38] sm:$0xff]
    %v352 = vld [vmem:[#allocation7 + $0x40] sm:$0xff]
    %v353 = vld [vmem:[#allocation7 + $0x48] sm:$0xff]
    %v354 = vld [vmem:[#allocation7 + $0x50] sm:$0xff]
    %v355 = vld [vmem:[#allocation7 + $0x58] sm:$0xff]
    %v356 = vld [vmem:[#allocation7 + $0x60] sm:$0xff]
    %v357 = vld [vmem:[#allocation7 + $0x68] sm:$0xff]
    %v358 = vld [vmem:[#allocation7 + $0x70] sm:$0xff]
    %v359 = vld [vmem:[#allocation7 + $0x78] sm:$0xff]
    %v360 = vld [vmem:[#allocation7 + $0x80] sm:$0xff]
    %v361 = vld [vmem:[#allocation7 + $0x88] sm:$0xff]
    %v362 = vld [vmem:[#allocation7 + $0x90] sm:$0xff]
    %v363 = vld [vmem:[#allocation7 + $0x98] sm:$0xff]
    %v364 = vld [vmem:[#allocation7 + $0xa0] sm:$0xff]
    %v365 = vld [vmem:[#allocation7 + $0xa8] sm:$0xff]
    %v366 = vld [vmem:[#allocation7 + $0xb0] sm:$0xff]
    %v367 = vld [vmem:[#allocation7 + $0xb8] sm:$0xff]
    %v368 = vld [vmem:[#allocation7 + $0xc0] sm:$0xff]
    %v369 = vld [vmem:[#allocation7 + $0xc8] sm:$0xff]
    %v370 = vld [vmem:[#allocation7 + $0xd0] sm:$0xff]
    %v371 = vld [vmem:[#allocation7 + $0xd8] sm:$0xff]
    %v372 = vld [vmem:[#allocation7 + $0xe0] sm:$0xff]
    %v373 = vld [vmem:[#allocation7 + $0xe8] sm:$0xff]
    %v374 = vld [vmem:[#allocation7 + $0xf0] sm:$0xff]
    %v375 = vld [vmem:[#allocation7 + $0xf8] sm:$0xff]
    %v376 = vld [vmem:[#allocation7 + $0x100] sm:$0xff]
    %v377 = vld [vmem:[#allocation7 + $0x108] sm:$0xff]
    %v378 = vld [vmem:[#allocation7 + $0x110] sm:$0xff]
    %v379 = vld [vmem:[#allocation7 + $0x118] sm:$0xff]
    %v380 = vld [vmem:[#allocation7 + $0x120] sm:$0xff]
    %v381 = vld [vmem:[#allocation7 + $0x128] sm:$0xff]
    %v382 = vld [vmem:[#allocation7 + $0x130] sm:$0xff]
    %v383 = vld [vmem:[#allocation7 + $0x138] sm:$0xff]
    %v384 = vld [vmem:[#allocation7 + $0x140] sm:$0xff]
    %v385 = vld [vmem:[#allocation7 + $0x148] sm:$0xff]
    %v386 = vld [vmem:[#allocation7 + $0x150] sm:$0xff]
    %v387 = vld [vmem:[#allocation7 + $0x158] sm:$0xff]
    %v388 = vld [vmem:[#allocation7 + $0x160] sm:$0xff]
    %v389 = vld [vmem:[#allocation7 + $0x168] sm:$0xff]
    %v390 = vld [vmem:[#allocation7 + $0x170] sm:$0xff]
    %v391 = vld [vmem:[#allocation7 + $0x178] sm:$0xff]
    %v392 = vld [vmem:[#allocation7 + $0x180] sm:$0xff]
    %v393 = vld [vmem:[#allocation7 + $0x188] sm:$0xff]
    %v394 = vld [vmem:[#allocation7 + $0x190] sm:$0xff]
    %v395 = vld [vmem:[#allocation7 + $0x198] sm:$0xff]
    %v396 = vld [vmem:[#allocation7 + $0x1a0] sm:$0xff]
    %v397 = vld [vmem:[#allocation7 + $0x1a8] sm:$0xff]
    %v398 = vld [vmem:[#allocation7 + $0x1b0] sm:$0xff]
    %v399 = vld [vmem:[#allocation7 + $0x1b8] sm:$0xff]
    %v400 = vld [vmem:[#allocation7 + $0x1c0] sm:$0xff]
    %v401 = vld [vmem:[#allocation7 + $0x1c8] sm:$0xff]
    %v402 = vld [vmem:[#allocation7 + $0x1d0] sm:$0xff]
    %v403 = vld [vmem:[#allocation7 + $0x1d8] sm:$0xff]
    %v404 = vld [vmem:[#allocation7 + $0x1e0] sm:$0xff]
    %v405 = vld [vmem:[#allocation7 + $0x1e8] sm:$0xff]
    %v406 = vld [vmem:[#allocation7 + $0x1f0] sm:$0xff]
    %v407 = vld [vmem:[#allocation7 + $0x1f8] sm:$0xff]
    %v408 = vld [vmem:[%s4] sm:$0x1]
    %v410 = vlaneseq
    %v411 = vshrl.u32 %v410, 7
    %v412 = vsub.s32 0, %v411
    %v413 = vrot.slane %v408, %v412
    %415 = vmatprep.subr.mxu0 0.0
    %416 = vmatpush1.msra.mxu0 %v344
    %417 = vmatprep.subr.mxu0 0.0
    %418 = vmatpush1.msra.mxu0 %v345
    %419 = vmatprep.subr.mxu0 0.0
    %420 = vmatpush1.msra.mxu0 %v346
    %421 = vmatprep.subr.mxu0 0.0
    %422 = vmatpush1.msra.mxu0 %v347
    %423 = vmatprep.subr.mxu0 0.0
    %424 = vmatpush1.msra.mxu0 %v348
    %425 = vmatprep.subr.mxu0 0.0
    %426 = vmatpush1.msra.mxu0 %v349
    %427 = vmatprep.subr.mxu0 0.0
    %428 = vmatpush1.msra.mxu0 %v350
    %429 = vmatprep.subr.mxu0 0.0
    %430 = vmatpush1.msra.mxu0 %v351
    %431 = vmatprep.subr.mxu0 0.0
    %432 = vmatpush1.msra.mxu0 %v352
    %433 = vmatprep.subr.mxu0 0.0
    %434 = vmatpush1.msra.mxu0 %v353
    %435 = vmatprep.subr.mxu0 0.0
    %436 = vmatpush1.msra.mxu0 %v354
    %437 = vmatprep.subr.mxu0 0.0
    %438 = vmatpush1.msra.mxu0 %v355
    %439 = vmatprep.subr.mxu0 0.0
    %440 = vmatpush1.msra.mxu0 %v356
    %441 = vmatprep.subr.mxu0 0.0
    %442 = vmatpush1.msra.mxu0 %v357
    %443 = vmatprep.subr.mxu0 0.0
    %444 = vmatpush1.msra.mxu0 %v358
    %445 = vmatprep.subr.mxu0 0.0
    %446 = vmatpush1.msra.mxu0 %v359
    %447 = vmatprep.subr.mxu0 0.0
    %448 = vmatpush1.msra.mxu0 %v360
    %449 = vmatprep.subr.mxu0 0.0
    %450 = vmatpush1.msra.mxu0 %v361
    %451 = vmatprep.subr.mxu0 0.0
    %452 = vmatpush1.msra.mxu0 %v362
    %453 = vmatprep.subr.mxu0 0.0
    %454 = vmatpush1.msra.mxu0 %v363
    %455 = vmatprep.subr.mxu0 0.0
    %456 = vmatpush1.msra.mxu0 %v364
    %457 = vmatprep.subr.mxu0 0.0
    %458 = vmatpush1.msra.mxu0 %v365
    %459 = vmatprep.subr.mxu0 0.0
    %460 = vmatpush1.msra.mxu0 %v366
    %461 = vmatprep.subr.mxu0 0.0
    %462 = vmatpush1.msra.mxu0 %v367
    %463 = vmatprep.subr.mxu0 0.0
    %464 = vmatpush1.msra.mxu0 %v368
    %465 = vmatprep.subr.mxu0 0.0
    %466 = vmatpush1.msra.mxu0 %v369
    %467 = vmatprep.subr.mxu0 0.0
    %468 = vmatpush1.msra.mxu0 %v370
    %469 = vmatprep.subr.mxu0 0.0
    %470 = vmatpush1.msra.mxu0 %v371
    %471 = vmatprep.subr.mxu0 0.0
    %472 = vmatpush1.msra.mxu0 %v372
    %473 = vmatprep.subr.mxu0 0.0
    %474 = vmatpush1.msra.mxu0 %v373
    %475 = vmatprep.subr.mxu0 0.0
    %476 = vmatpush1.msra.mxu0 %v374
    %477 = vmatprep.subr.mxu0 0.0
    %478 = vmatpush1.msra.mxu0 %v375
    %479 = vmatprep.mubr.f32.mxu0 %v337
    %480 = vmatmul.mubr.f32.gmra.mrb[0].mxu0 %v336
    %v481 = vpop.f32.mrb[0].mxu0
    %v482 = vadd.f32 %v413, %v481
    %v483 = vpop.f32.mrb[0].mxu0
    %484 = vmatprep.mubr.f32.mxu0 %v341
    %485 = vmatmul.mubr.f32.gmra.mrb[0].mxu0 %v340
    %v486 = vpop.f32.mrb[0].mxu0
    %v487 = vadd.f32 %v413, %v486
    %v488 = vpop.f32.mrb[0].mxu0
    %489 = vdwg.mxu0
    %490 = vmatprep.subr.mxu0 0.0
    %491 = vmatpush1.msra.mxu0 %v376
    %492 = vmatprep.subr.mxu0 0.0
    %493 = vmatpush1.msra.mxu0 %v377
    %494 = vmatprep.subr.mxu0 0.0
    %495 = vmatpush1.msra.mxu0 %v378
    %496 = vmatprep.subr.mxu0 0.0
    %497 = vmatpush1.msra.mxu0 %v379
    %498 = vmatprep.subr.mxu0 0.0
    %499 = vmatpush1.msra.mxu0 %v380
    %500 = vmatprep.subr.mxu0 0.0
    %501 = vmatpush1.msra.mxu0 %v381
    %502 = vmatprep.subr.mxu0 0.0
    %503 = vmatpush1.msra.mxu0 %v382
    %504 = vmatprep.subr.mxu0 0.0
    %505 = vmatpush1.msra.mxu0 %v383
    %506 = vmatprep.subr.mxu0 0.0
    %507 = vmatpush1.msra.mxu0 %v384
    %508 = vmatprep.subr.mxu0 0.0
    %509 = vmatpush1.msra.mxu0 %v385
    %510 = vmatprep.subr.mxu0 0.0
    %511 = vmatpush1.msra.mxu0 %v386
    %512 = vmatprep.subr.mxu0 0.0
    %513 = vmatpush1.msra.mxu0 %v387
    %514 = vmatprep.subr.mxu0 0.0
    %515 = vmatpush1.msra.mxu0 %v388
    %516 = vmatprep.subr.mxu0 0.0
    %517 = vmatpush1.msra.mxu0 %v389
    %518 = vmatprep.subr.mxu0 0.0
    %519 = vmatpush1.msra.mxu0 %v390
    %520 = vmatprep.subr.mxu0 0.0
    %521 = vmatpush1.msra.mxu0 %v391
    %522 = vmatprep.subr.mxu0 0.0
    %523 = vmatpush1.msra.mxu0 %v392
    %524 = vmatprep.subr.mxu0 0.0
    %525 = vmatpush1.msra.mxu0 %v393
    %526 = vmatprep.subr.mxu0 0.0
    %527 = vmatpush1.msra.mxu0 %v394
    %528 = vmatprep.subr.mxu0 0.0
    %529 = vmatpush1.msra.mxu0 %v395
    %530 = vmatprep.subr.mxu0 0.0
    %531 = vmatpush1.msra.mxu0 %v396
    %532 = vmatprep.subr.mxu0 0.0
    %533 = vmatpush1.msra.mxu0 %v397
    %534 = vmatprep.subr.mxu0 0.0
    %535 = vmatpush1.msra.mxu0 %v398
    %536 = vmatprep.subr.mxu0 0.0
    %537 = vmatpush1.msra.mxu0 %v399
    %538 = vmatprep.subr.mxu0 0.0
    %539 = vmatpush1.msra.mxu0 %v400
    %540 = vmatprep.subr.mxu0 0.0
    %541 = vmatpush1.msra.mxu0 %v401
    %542 = vmatprep.subr.mxu0 0.0
    %543 = vmatpush1.msra.mxu0 %v402
    %544 = vmatprep.subr.mxu0 0.0
    %545 = vmatpush1.msra.mxu0 %v403
    %546 = vmatprep.subr.mxu0 0.0
    %547 = vmatpush1.msra.mxu0 %v404
    %548 = vmatprep.subr.mxu0 0.0
    %549 = vmatpush1.msra.mxu0 %v405
    %550 = vmatprep.subr.mxu0 0.0
    %551 = vmatpush1.msra.mxu0 %v406
    %552 = vmatprep.subr.mxu0 0.0
    %553 = vmatpush1.msra.mxu0 %v407
    %554 = vmatprep.mubr.f32.mxu0 %v339
    %555 = vmatmul.mubr.f32.gmra.mrb[0].mxu0 %v338
    %v556 = vpop.f32.mrb[0].mxu0
    %v557 = vadd.f32 %v482, %v556
    %v558 = vpop.f32.mrb[0].mxu0
    %559 = vmatprep.mubr.f32.mxu0 %v343
    %560 = vmatmul.mubr.f32.gmra.mrb[0].mxu0 %v342
    %v561 = vpop.f32.mrb[0].mxu0
    %v562 = vadd.f32 %v487, %v561
    %v563 = vpop.f32.mrb[0].mxu0
    %564 = vdwg.mxu0
    %565 = vst [vmem:[#allocation8] sm:$0xff] %v557
    %566 = vst [vmem:[#allocation8 + $0x8] sm:$0xff] %v562
    // Predicated region
    $region34: #{tpu_custom_call.1} parent=1 // pred_check
      _
    $region35: #{tpu_custom_call.1} parent=1 // pred_check_branch
      %568 = sbr.rel (0) target = $region37
    $region36: #{tpu_custom_call.1} parent=1 // pred_region
      %s570 = ssub.s32 256, 256
      %571 = vsyncadd [#allocation4], %s570
      %s572 = sshll.u32 [#allocation8], 4
      %s573 = int_to_ptr.vmem [resolvable:$true] %s572
      %578 = dma.vmem_to_hbm [thread:$0]  %s573, 256, %s5, [#allocation4], 128, 128, 8
    $region37: #{tpu_custom_call.1} parent=1 // pred_fallthru
      _
    // Predicated region
    $region38: #{tpu_custom_call.1} parent=1 // pred_check
      _
    $region39: #{tpu_custom_call.1} parent=1 // pred_check_branch
      %580 = sbr.rel (0) target = $region41
    $region40: #{tpu_custom_call.1} parent=1 // pred_region
      %581 = dma.done [#allocation4], 256
    $region41: #{tpu_custom_call.1} parent=1 // pred_fallthru
      _
    %582 = vsyncpa [#allocation3], 1
    %583 = vsyncpa [#allocation6], 1
    %584 = vsyncpa [#allocation4], 1

</llo_original>
